<compile_context>
chip_gen: v7x
topology: tpu7x:2x2x1
jax: 0.10.0
libtpu: 0.0.40
codegen_flags: <defaults>
</compile_context>

<pallas_src>
import jax
import jax.numpy as jnp
import numpy as np
from jax.experimental import pallas as pl
from jax.experimental.pallas import tpu as pltpu


def _round_up(x, m):
    return ((x + m - 1) // m) * m


# Cap on the batch tile: double-buffered x (TB*16*4) + out (TB*128*4 in VMEM)
# blocks stay ~9 MiB at TB=8192, comfortably under the 32 MiB scoped-VMEM limit
# used below on v5e / v6e / v7x.
_MAX_TILE_B = 8192


def _choose_batch_tile(B, tile_b=None):
    """Pick (tile_b, grid_steps).

    - >= 2 balanced steps whenever B > 8 (keeps both v7x TensorCores busy via
      the 'parallel' batch axis; one extra ~0.35us step is noise on 1-TC chips).
    - tile rounded to the 8-row sublane granule, sized so the ragged last block
      wastes < 8 rows (masked on store, so no extra HBM traffic either way).
    - capped at _MAX_TILE_B for VMEM headroom on all generations.
    """
    if tile_b is not None:
        if tile_b >= B:
            return B, 1
        tb = max(8, _round_up(min(tile_b, _MAX_TILE_B), 8))
        return tb, pl.cdiv(B, tb)
    if B <= 8:
        return B, 1
    n_steps = max(2, pl.cdiv(B, _MAX_TILE_B))
    tb = min(_MAX_TILE_B, _round_up(pl.cdiv(B, n_steps), 8))
    return tb, pl.cdiv(B, tb)


def mccqr_mlp_kernel(x_ref, w1_ref, b1_ref, w2_ref, b2_ref, o_ref):
    # fc1 (+ folded BN affine + bias): [TB, D] @ [D, H] -> [TB, H]   (MXU)
    h = jnp.dot(x_ref[...], w1_ref[...], preferred_element_type=jnp.float32)
    h = jnp.maximum(h + b1_ref[...], 0.0)          # bias + relu     (VPU)
    # dropout1: identity in eval mode with dropout disabled (no-op)
    # fc2: [TB, H] @ [H, Q] -> [TB, Q]   (MXU); Q=101 == full output dim, so the
    # block is legal and we write exactly the bytes the caller needs.
    o = jnp.dot(h, w2_ref[...], preferred_element_type=jnp.float32) + b2_ref[...]
    o_ref[...] = o.astype(o_ref.dtype)


def fold_mccqr_params(w1, b1, bn_gamma, bn_beta, bn_mean, bn_var, w2, b2,
                      eps=1e-5):
    """One-time parameter folding (hoist out of the per-call path).

    BN eval:  (h - mean) / sqrt(var + eps) * gamma + beta == h*scale + shift
    Folded:   relu((x@w1 + b1)*scale + shift) == relu(x@(w1*scale) + (b1*scale+shift))
    """
    scale = bn_gamma / jnp.sqrt(bn_var + eps)            # [H]
    shift = bn_beta - bn_mean * scale                    # [H]
    w1f = (w1 * scale[None, :]).astype(jnp.float32)      # [D, H]
    b1f = (b1 * scale + shift).reshape(1, -1).astype(jnp.float32)   # [1, H]
    w2f = w2.astype(jnp.float32)                         # [H, Q]
    b2f = b2.reshape(1, -1).astype(jnp.float32)          # [1, Q]
    return w1f, b1f, w2f, b2f


def mccqr_mlp_forward_folded(x, w1f, b1f, w2f, b2f, *, tile_b=None):
    """x: [B, input_dim] float32, pre-folded params. Returns [B, n_outputs]."""
    B, D = x.shape
    H = w1f.shape[1]
    Q = w2f.shape[1]
    TB, grid = _choose_batch_tile(B, tile_b)

    return pl.pallas_call(
        mccqr_mlp_kernel,
        out_shape=jax.ShapeDtypeStruct((B, Q), jnp.float32),
        grid_spec=pltpu.PrefetchScalarGridSpec(
            num_scalar_prefetch=0,
            grid=(grid,),
            in_specs=[
                pl.BlockSpec((TB, D), lambda i: (i, 0)),   # x   (tiled over batch)
                pl.BlockSpec((D, H), lambda i: (0, 0)),    # w1' (VMEM-resident)
                pl.BlockSpec((1, H), lambda i: (0, 0)),    # b1' (VMEM-resident)
                pl.BlockSpec((H, Q), lambda i: (0, 0)),    # w2  (VMEM-resident)
                pl.BlockSpec((1, Q), lambda i: (0, 0)),    # b2  (VMEM-resident)
            ],
            out_specs=pl.BlockSpec((TB, Q), lambda i: (i, 0)),
        ),
        compiler_params=pltpu.CompilerParams(
            dimension_semantics=("parallel",),             # 2 TCs on v7x
            vmem_limit_bytes=32 * 1024 * 1024,             # safe on v5e/v6e/v7x
        ),
    )(x, w1f, b1f, w2f, b2f)


def mccqr_mlp_forward(x, w1, b1, bn_gamma, bn_beta, bn_mean, bn_var, w2, b2,
                      eps=1e-5, tile_b=None):
    """Convenience one-shot wrapper (folds params every call; prefer folding
    once via fold_mccqr_params for repeated eval)."""
    folded = fold_mccqr_params(w1, b1, bn_gamma, bn_beta, bn_mean, bn_var,
                               w2, b2, eps=eps)
    return mccqr_mlp_forward_folded(x, *folded, tile_b=tile_b)


def reference_forward(x, w1, b1, bn_gamma, bn_beta, bn_mean, bn_var, w2, b2,
                      eps=1e-5):
    h = x @ w1 + b1
    h = (h - bn_mean) / jnp.sqrt(bn_var + eps) * bn_gamma + bn_beta
    h = jnp.maximum(h, 0.0)
    return h @ w2 + b2


if __name__ == "__main__":
    # Shapes consistent with the module: input_dim features per sample,
    # hidden_dim1 hidden units, n_outputs = 101 quantiles (default).
    B = 8
    input_dim = 16
    hidden_dim1 = 32
    n_outputs = 101  # len(np.arange(0.01, 1.01, 0.01))

    key = jax.random.PRNGKey(0)
    kx, kw1, kb1, kg, kbeta, kmean, kvar, kw2, kb2 = jax.random.split(key, 9)

    x = jax.random.normal(kx, (B, input_dim), dtype=jnp.float32)

    # Deterministic synthetic parameters (PyTorch-like uniform init ranges).
    lim1 = 1.0 / np.sqrt(input_dim)
    w1 = jax.random.uniform(kw1, (input_dim, hidden_dim1),
                            minval=-lim1, maxval=lim1, dtype=jnp.float32)
    b1 = jax.random.uniform(kb1, (hidden_dim1,),
                            minval=-lim1, maxval=lim1, dtype=jnp.float32)

    bn_gamma = jax.random.uniform(kg, (hidden_dim1,), minval=0.5, maxval=1.5,
                                  dtype=jnp.float32)
    bn_beta = jax.random.normal(kbeta, (hidden_dim1,), dtype=jnp.float32) * 0.1
    bn_mean = jax.random.normal(kmean, (hidden_dim1,), dtype=jnp.float32) * 0.1
    bn_var = jax.random.uniform(kvar, (hidden_dim1,), minval=0.5, maxval=1.5,
                                dtype=jnp.float32)

    lim2 = 1.0 / np.sqrt(hidden_dim1)
    w2 = jax.random.uniform(kw2, (hidden_dim1, n_outputs),
                            minval=-lim2, maxval=lim2, dtype=jnp.float32)
    b2 = jax.random.uniform(kb2, (n_outputs,),
                            minval=-lim2, maxval=lim2, dtype=jnp.float32)

    # Fold BN + biases ONCE (hoisted out of the per-call path, as the model
    # would do at load time).
    w1f, b1f, w2f, b2f = jax.block_until_ready(
        fold_mccqr_params(w1, b1, bn_gamma, bn_beta, bn_mean, bn_var, w2, b2))

    # Case 1: small single-tile batch (B=8, one grid step).
    out = mccqr_mlp_forward_folded(x, w1f, b1f, w2f, b2f)
    out = jax.block_until_ready(out)
    ref = reference_forward(x, w1, b1, bn_gamma, bn_beta, bn_mean, bn_var,
                            w2, b2)
    np.testing.assert_allclose(np.asarray(out), np.asarray(ref),
                               rtol=1e-5, atol=1e-5)
    assert out.shape == (B, n_outputs)

    # Case 2: batch not a multiple of 8, multi-step grid -> exercises the
    # >=2-step tile selection, ragged last block (masked store), and the
    # direct (B, 101) output (no padding / no post-kernel slice anywhere).
    B2 = 37
    x2 = jax.random.normal(jax.random.PRNGKey(1), (B2, input_dim),
                           dtype=jnp.float32)
    out2 = mccqr_mlp_forward_folded(x2, w1f, b1f, w2f, b2f)
    out2 = jax.block_until_ready(out2)
    ref2 = reference_forward(x2, w1, b1, bn_gamma, bn_beta, bn_mean, bn_var,
                             w2, b2)
    np.testing.assert_allclose(np.asarray(out2), np.asarray(ref2),
                               rtol=1e-5, atol=1e-5)
    assert out2.shape == (B2, n_outputs)

    # Case 3: explicit tile override path (tile_b=16 over B=37 -> 3 steps).
    out3 = mccqr_mlp_forward(x2, w1, b1, bn_gamma, bn_beta, bn_mean, bn_var,
                             w2, b2, tile_b=16)
    out3 = jax.block_until_ready(out3)
    np.testing.assert_allclose(np.asarray(out3), np.asarray(ref2),
                               rtol=1e-5, atol=1e-5)

    # TODO(synk): training-mode / MC-dropout path (ControlledDropout enabled)
    # is stochastic and not part of the eval forward implemented here.
    print("KERNEL_OK")
</pallas_src>

<mosaic_0001>
module attributes {stable_mosaic.version = 11 : i64} {
  func.func @mccqr_mlp_kernel(%arg0: i32, %arg1: memref<8x16xf32, #tpu.memory_space<vmem>>, %arg2: memref<16x32xf32, #tpu.memory_space<vmem>>, %arg3: memref<1x32xf32, #tpu.memory_space<vmem>>, %arg4: memref<32x101xf32, #tpu.memory_space<vmem>>, %arg5: memref<1x101xf32, #tpu.memory_space<vmem>>, %arg6: memref<8x101xf32, #tpu.memory_space<vmem>>) attributes {dimension_semantics = [#tpu.dimension_semantics<parallel>], iteration_bounds = array<i64: 1>, scalar_prefetch = 0 : i64, scratch_operands = 0 : i64, tpu.core_type = #tpu.core_type<tc>, window_params = [{transform_indices = @transform_0, window_bounds = array<i64: 8, 16>}, {pipeline_mode = #tpu.pipeline_mode<synchronous>, transform_indices = @transform_1, window_bounds = array<i64: 16, 32>}, {pipeline_mode = #tpu.pipeline_mode<synchronous>, transform_indices = @transform_2, window_bounds = array<i64: 1, 32>}, {pipeline_mode = #tpu.pipeline_mode<synchronous>, transform_indices = @transform_3, window_bounds = array<i64: 32, 101>}, {pipeline_mode = #tpu.pipeline_mode<synchronous>, transform_indices = @transform_4, window_bounds = array<i64: 1, 101>}, {transform_indices = @transform_5, window_bounds = array<i64: 8, 101>}]} {
    %c0 = arith.constant 0 : index
    %c0_0 = arith.constant 0 : index
    %0 = vector.load %arg1[%c0, %c0_0] : memref<8x16xf32, #tpu.memory_space<vmem>>, vector<8x16xf32>
    %c0_1 = arith.constant 0 : index
    %c0_2 = arith.constant 0 : index
    %1 = vector.load %arg2[%c0_1, %c0_2] : memref<16x32xf32, #tpu.memory_space<vmem>>, vector<16x32xf32>
    %cst = arith.constant dense<0.000000e+00> : vector<8x32xf32>
    %2 = tpu.matmul %0, %1, %cst {dimension_numbers = #tpu.dot_dimension_numbers<[1], [0], [0], [1], [0, 0, 1, 1], [], []>} : vector<8x16xf32>, vector<16x32xf32>, vector<8x32xf32> -> vector<8x32xf32>
    %c0_3 = arith.constant 0 : index
    %c0_4 = arith.constant 0 : index
    %3 = vector.load %arg3[%c0_3, %c0_4] : memref<1x32xf32, #tpu.memory_space<vmem>>, vector<1x32xf32>
    %4 = vector.broadcast %3 : vector<1x32xf32> to vector<8x32xf32>
    %5 = arith.addf %2, %4 : vector<8x32xf32>
    %cst_5 = arith.constant 0.000000e+00 : f32
    %6 = vector.broadcast %cst_5 : f32 to vector<8x32xf32>
    %7 = arith.maximumf %5, %6 : vector<8x32xf32>
    %c0_6 = arith.constant 0 : index
    %c0_7 = arith.constant 0 : index
    %8 = vector.load %arg4[%c0_6, %c0_7] : memref<32x101xf32, #tpu.memory_space<vmem>>, vector<32x101xf32>
    %cst_8 = arith.constant dense<0.000000e+00> : vector<8x101xf32>
    %9 = tpu.matmul %7, %8, %cst_8 {dimension_numbers = #tpu.dot_dimension_numbers<[1], [0], [0], [1], [0, 0, 1, 1], [], []>} : vector<8x32xf32>, vector<32x101xf32>, vector<8x101xf32> -> vector<8x101xf32>
    %c0_9 = arith.constant 0 : index
    %c0_10 = arith.constant 0 : index
    %10 = vector.load %arg5[%c0_9, %c0_10] : memref<1x101xf32, #tpu.memory_space<vmem>>, vector<1x101xf32>
    %11 = vector.broadcast %10 : vector<1x101xf32> to vector<8x101xf32>
    %12 = arith.addf %9, %11 : vector<8x101xf32>
    %c0_11 = arith.constant 0 : index
    %c0_12 = arith.constant 0 : index
    %13 = vector.load %arg6[%c0_11, %c0_12] : memref<8x101xf32, #tpu.memory_space<vmem>>, vector<8x101xf32>
    tpu.vector_store %arg6[%c0_11, %c0_12], %12 {strides = array<i32>} : memref<8x101xf32, #tpu.memory_space<vmem>>, vector<8x101xf32>,
    return
  }
  func.func @transform_0(%arg0: i32) -> (i32, i32) {
    %c0_i32 = arith.constant 0 : i32
    %c0_i32_0 = arith.constant 0 : i32
    return %arg0, %c0_i32 : i32, i32
  }
  func.func @transform_1(%arg0: i32) -> (i32, i32) {
    %c0_i32 = arith.constant 0 : i32
    %c0_i32_0 = arith.constant 0 : i32
    %c0_i32_1 = arith.constant 0 : i32
    return %c0_i32, %c0_i32_0 : i32, i32
  }
  func.func @transform_2(%arg0: i32) -> (i32, i32) {
    %c0_i32 = arith.constant 0 : i32
    %c0_i32_0 = arith.constant 0 : i32
    %c0_i32_1 = arith.constant 0 : i32
    return %c0_i32, %c0_i32_0 : i32, i32
  }
  func.func @transform_3(%arg0: i32) -> (i32, i32) {
    %c0_i32 = arith.constant 0 : i32
    %c0_i32_0 = arith.constant 0 : i32
    %c0_i32_1 = arith.constant 0 : i32
    return %c0_i32, %c0_i32_0 : i32, i32
  }
  func.func @transform_4(%arg0: i32) -> (i32, i32) {
    %c0_i32 = arith.constant 0 : i32
    %c0_i32_0 = arith.constant 0 : i32
    %c0_i32_1 = arith.constant 0 : i32
    return %c0_i32, %c0_i32_0 : i32, i32
  }
  func.func @transform_5(%arg0: i32) -> (i32, i32) {
    %c0_i32 = arith.constant 0 : i32
    %c0_i32_0 = arith.constant 0 : i32
    return %arg0, %c0_i32 : i32, i32
  }
}

</mosaic_0001>

<llo_original>
// kernel: tpu_custom_call.1
$region0: #{tpu_custom_call.1}
  #allocation0 [shape = 'u32[]', space=smem, size = 0x4, offset = 0x4, fixed_abs, tag = 'smem constant byte address 0x4 - core index']
  #allocation1 [shape = 'u32[144,128]{1,0:T(1,128)}', space=vmem, size = 0x12000, scoped, tag = 'internal scratch']
  %s0 = inlined_call_operand.hbm [shape: f32[8,16], index: 0, kind: input, shape index: {}]
  %s1 = inlined_call_operand.hbm [shape: f32[16,32], index: 1, kind: input, shape index: {}]
  %s2 = inlined_call_operand.vmem [shape: f32[1,32], index: 2, kind: input, shape index: {}]
  %s3 = inlined_call_operand.hbm [shape: f32[32,101], index: 3, kind: input, shape index: {}]
  %s4 = inlined_call_operand.vmem [shape: f32[1,101], index: 4, kind: input, shape index: {}]
  %s5 = inlined_call_operand.hbm [shape: f32[8,101], index: 5, kind: output, shape index: {}]
  %s6 = sld [smem:[#allocation0]]
  $region42: #{tpu_custom_call.1} parent=0
    _
  %s8 = ssub.s32 1, %s6
  %s9 = scalar_select 0, %s8, %s6
  $region1: #{tpu_custom_call.1} parent=0
    #allocation2 [shape = 'u8[4096]{0}', space=vmem, size = 0x1000, scoped, tag = 'input window, operand 0, single buffered']
    #allocation3 [shape = 's32[1]{0}', space=sflag, size = 0x4, scoped, tag = 'scoped memory for tpu_custom_call.1']
    #allocation4 [shape = 's32[1]{0}', space=sflag, size = 0x4, scoped, tag = 'scoped memory for tpu_custom_call.1']
    #allocation5 [shape = 'u8[8192]{0}', space=vmem, size = 0x2000, scoped, tag = 'input window, operand 1, single buffered']
    #allocation6 [shape = 's32[1]{0}', space=sflag, size = 0x4, scoped, tag = 'scoped memory for tpu_custom_call.1']
    #allocation7 [shape = 'u8[16384]{0}', space=vmem, size = 0x4000, scoped, tag = 'input window, operand 3, single buffered']
    #allocation8 [shape = 'u8[4096]{0}', space=vmem, size = 0x1000, scoped, tag = 'output window, operand 0, single buffered']
    %10 = vsyncpa [#allocation3], 0
    %11 = vsyncpa [#allocation6], 0
    %12 = vsyncpa [#allocation4], 0
    // Predicated region
    $region2: #{tpu_custom_call.1} parent=1 // pred_check
      _
    $region3: #{tpu_custom_call.1} parent=1 // pred_check_branch
      %14 = sbr.rel (0) target = $region5
    $region4: #{tpu_custom_call.1} parent=1 // pred_region
      %s16 = ssub.s32 128, 128
      %17 = vsyncadd [#allocation3], %s16
      %s19 = sshll.u32 [#allocation2], 4
      %s20 = int_to_ptr.vmem [resolvable:$true] %s19
      %22 = dma.hbm_to_vmem [thread:$0]  %s0, 128, %s20, [#allocation3]
    $region5: #{tpu_custom_call.1} parent=1 // pred_fallthru
      _
    // Predicated region
    $region6: #{tpu_custom_call.1} parent=1 // pred_check
      _
    $region7: #{tpu_custom_call.1} parent=1 // pred_check_branch
      %24 = sbr.rel (0) target = $region9
    $region8: #{tpu_custom_call.1} parent=1 // pred_region
      %s26 = ssub.s32 256, 256
      %27 = vsyncadd [#allocation6], %s26
      %s28 = sshll.u32 [#allocation5], 4
      %s29 = int_to_ptr.vmem [resolvable:$true] %s28
      %34 = dma.hbm_to_vmem [thread:$0]  %s1, 256, %s29, [#allocation6], 128, 128, 8
    $region9: #{tpu_custom_call.1} parent=1 // pred_fallthru
      _
    // Predicated region
    $region10: #{tpu_custom_call.1} parent=1 // pred_check
      _
    $region11: #{tpu_custom_call.1} parent=1 // pred_check_branch
      %36 = sbr.rel (0) target = $region13
    $region12: #{tpu_custom_call.1} parent=1 // pred_region
      _
    $region13: #{tpu_custom_call.1} parent=1 // pred_fallthru
      _
    // Predicated region
    $region14: #{tpu_custom_call.1} parent=1 // pred_check
      _
    $region15: #{tpu_custom_call.1} parent=1 // pred_check_branch
      %38 = sbr.rel (0) target = $region17
    $region16: #{tpu_custom_call.1} parent=1 // pred_region
      %s40 = ssub.s32 512, 512
      %41 = vsyncadd [#allocation6], %s40
      %s42 = sshll.u32 [#allocation7], 4
      %s43 = int_to_ptr.vmem [resolvable:$true] %s42
      %48 = dma.hbm_to_vmem [thread:$0]  %s3, 512, %s43, [#allocation6], 128, 128, 8
    $region17: #{tpu_custom_call.1} parent=1 // pred_fallthru
      _
    // Predicated region
    $region18: #{tpu_custom_call.1} parent=1 // pred_check
      _
    $region19: #{tpu_custom_call.1} parent=1 // pred_check_branch
      %50 = sbr.rel (0) target = $region21
    $region20: #{tpu_custom_call.1} parent=1 // pred_region
      _
    $region21: #{tpu_custom_call.1} parent=1 // pred_fallthru
      _
    // Predicated region
    $region22: #{tpu_custom_call.1} parent=1 // pred_check
      _
    $region23: #{tpu_custom_call.1} parent=1 // pred_check_branch
      %52 = sbr.rel (0) target = $region25
    $region24: #{tpu_custom_call.1} parent=1 // pred_region
      %53 = dma.done [#allocation3], 128
    $region25: #{tpu_custom_call.1} parent=1 // pred_fallthru
      _
    // Predicated region
    $region26: #{tpu_custom_call.1} parent=1 // pred_check
      _
    $region27: #{tpu_custom_call.1} parent=1 // pred_check_branch
      %55 = sbr.rel (0) target = $region29
    $region28: #{tpu_custom_call.1} parent=1 // pred_region
      %56 = dma.done [#allocation6], 256
    $region29: #{tpu_custom_call.1} parent=1 // pred_fallthru
      _
    // Predicated region
    $region30: #{tpu_custom_call.1} parent=1 // pred_check
      _
    $region31: #{tpu_custom_call.1} parent=1 // pred_check_branch
      %58 = sbr.rel (0) target = $region33
    $region32: #{tpu_custom_call.1} parent=1 // pred_region
      %59 = dma.done [#allocation6], 512
    $region33: #{tpu_custom_call.1} parent=1 // pred_fallthru
      _
    %v60 = vld [vmem:[#allocation2] sm:$0xff]
    %v61 = vld [vmem:[#allocation5] sm:$0xff]
    %v62 = vld [vmem:[#allocation5 + $0x8] sm:$0xff]
    %v63 = vld [vmem:[%s2] sm:$0x1]
    %v65 = vlaneseq
    %v66 = vshrl.u32 %v65, 7
    %v67 = vsub.s32 0, %v66
    %v68 = vrot.slane %v63, %v67
    %vm70 = vcmask 130048
    %v72 = vsel %vm70, %v60, 0
    %74 = vmatprep.subr.mxu0 0.0
    %75 = vmatpush1.msra.mxu0 %v61
    %76 = vmatprep.subr.mxu0 0.0
    %77 = vmatpush1.msra.mxu0 %v62
    %78 = vmatprep.subr.mxu0 0.0
    %79 = vmatpush1.msra.mxu0 0.0
    %80 = vmatprep.subr.mxu0 0.0
    %81 = vmatpush1.msra.mxu0 0.0
    %82 = vmatprep.subr.mxu0 0.0
    %83 = vmatpush1.msra.mxu0 0.0
    %84 = vmatprep.subr.mxu0 0.0
    %85 = vmatpush1.msra.mxu0 0.0
    %86 = vmatprep.subr.mxu0 0.0
    %87 = vmatpush1.msra.mxu0 0.0
    %88 = vmatprep.subr.mxu0 0.0
    %89 = vmatpush1.msra.mxu0 0.0
    %90 = vmatprep.subr.mxu0 0.0
    %91 = vmatpush1.msra.mxu0 0.0
    %92 = vmatprep.subr.mxu0 0.0
    %93 = vmatpush1.msra.mxu0 0.0
    %94 = vmatprep.subr.mxu0 0.0
    %95 = vmatpush1.msra.mxu0 0.0
    %96 = vmatprep.subr.mxu0 0.0
    %97 = vmatpush1.msra.mxu0 0.0
    %98 = vmatprep.subr.mxu0 0.0
    %99 = vmatpush1.msra.mxu0 0.0
    %100 = vmatprep.subr.mxu0 0.0
    %101 = vmatpush1.msra.mxu0 0.0
    %102 = vmatprep.subr.mxu0 0.0
    %103 = vmatpush1.msra.mxu0 0.0
    %104 = vmatprep.subr.mxu0 0.0
    %105 = vmatpush1.msra.mxu0 0.0
    %106 = vmatprep.subr.mxu0 0.0
    %107 = vmatpush1.msra.mxu0 0.0
    %108 = vmatprep.subr.mxu0 0.0
    %109 = vmatpush1.msra.mxu0 0.0
    %110 = vmatprep.subr.mxu0 0.0
    %111 = vmatpush1.msra.mxu0 0.0
    %112 = vmatprep.subr.mxu0 0.0
    %113 = vmatpush1.msra.mxu0 0.0
    %114 = vmatprep.subr.mxu0 0.0
    %115 = vmatpush1.msra.mxu0 0.0
    %116 = vmatprep.subr.mxu0 0.0
    %117 = vmatpush1.msra.mxu0 0.0
    %118 = vmatprep.subr.mxu0 0.0
    %119 = vmatpush1.msra.mxu0 0.0
    %120 = vmatprep.subr.mxu0 0.0
    %121 = vmatpush1.msra.mxu0 0.0
    %122 = vmatprep.subr.mxu0 0.0
    %123 = vmatpush1.msra.mxu0 0.0
    %124 = vmatprep.subr.mxu0 0.0
    %125 = vmatpush1.msra.mxu0 0.0
    %126 = vmatprep.subr.mxu0 0.0
    %127 = vmatpush1.msra.mxu0 0.0
    %128 = vmatprep.subr.mxu0 0.0
    %129 = vmatpush1.msra.mxu0 0.0
    %130 = vmatprep.subr.mxu0 0.0
    %131 = vmatpush1.msra.mxu0 0.0
    %132 = vmatprep.subr.mxu0 0.0
    %133 = vmatpush1.msra.mxu0 0.0
    %134 = vmatprep.subr.mxu0 0.0
    %135 = vmatpush1.msra.mxu0 0.0
    %136 = vmatprep.subr.mxu0 0.0
    %137 = vmatpush1.msra.mxu0 0.0
    %138 = vmatprep.mubr.f32.mxu0 0.0
    %139 = vmatmul.mubr.f32.gmra.mrb[0].mxu0 %v72
    %v140 = vpop.f32.mrb[0].mxu0
    %v141 = vadd.f32 %v68, %v140
    %v142 = vpop.f32.mrb[0].mxu0
    %143 = vdwg.mxu0
    %v144 = vmax.f32 %v141, 0.0
    %v145 = vld [vmem:[#allocation7] sm:$0xff]
    %v146 = vld [vmem:[#allocation7 + $0x8] sm:$0xff]
    %v147 = vld [vmem:[#allocation7 + $0x10] sm:$0xff]
    %v148 = vld [vmem:[#allocation7 + $0x18] sm:$0xff]
    %v149 = vld [vmem:[%s4] sm:$0x1]
    %v151 = vlaneseq
    %v152 = vshrl.u32 %v151, 7
    %v153 = vsub.s32 0, %v152
    %v154 = vrot.slane %v149, %v153
    %vm156 = vcmask 261120
    %v158 = vsel %vm156, %v144, 0
    %160 = vmatprep.subr.mxu0 0.0
    %161 = vmatpush1.msra.mxu0 %v145
    %162 = vmatprep.subr.mxu0 0.0
    %163 = vmatpush1.msra.mxu0 %v146
    %164 = vmatprep.subr.mxu0 0.0
    %165 = vmatpush1.msra.mxu0 %v147
    %166 = vmatprep.subr.mxu0 0.0
    %167 = vmatpush1.msra.mxu0 %v148
    %168 = vmatprep.subr.mxu0 0.0
    %169 = vmatpush1.msra.mxu0 0.0
    %170 = vmatprep.subr.mxu0 0.0
    %171 = vmatpush1.msra.mxu0 0.0
    %172 = vmatprep.subr.mxu0 0.0
    %173 = vmatpush1.msra.mxu0 0.0
    %174 = vmatprep.subr.mxu0 0.0
    %175 = vmatpush1.msra.mxu0 0.0
    %176 = vmatprep.subr.mxu0 0.0
    %177 = vmatpush1.msra.mxu0 0.0
    %178 = vmatprep.subr.mxu0 0.0
    %179 = vmatpush1.msra.mxu0 0.0
    %180 = vmatprep.subr.mxu0 0.0
    %181 = vmatpush1.msra.mxu0 0.0
    %182 = vmatprep.subr.mxu0 0.0
    %183 = vmatpush1.msra.mxu0 0.0
    %184 = vmatprep.subr.mxu0 0.0
    %185 = vmatpush1.msra.mxu0 0.0
    %186 = vmatprep.subr.mxu0 0.0
    %187 = vmatpush1.msra.mxu0 0.0
    %188 = vmatprep.subr.mxu0 0.0
    %189 = vmatpush1.msra.mxu0 0.0
    %190 = vmatprep.subr.mxu0 0.0
    %191 = vmatpush1.msra.mxu0 0.0
    %192 = vmatprep.subr.mxu0 0.0
    %193 = vmatpush1.msra.mxu0 0.0
    %194 = vmatprep.subr.mxu0 0.0
    %195 = vmatpush1.msra.mxu0 0.0
    %196 = vmatprep.subr.mxu0 0.0
    %197 = vmatpush1.msra.mxu0 0.0
    %198 = vmatprep.subr.mxu0 0.0
    %199 = vmatpush1.msra.mxu0 0.0
    %200 = vmatprep.subr.mxu0 0.0
    %201 = vmatpush1.msra.mxu0 0.0
    %202 = vmatprep.subr.mxu0 0.0
    %203 = vmatpush1.msra.mxu0 0.0
    %204 = vmatprep.subr.mxu0 0.0
    %205 = vmatpush1.msra.mxu0 0.0
    %206 = vmatprep.subr.mxu0 0.0
    %207 = vmatpush1.msra.mxu0 0.0
    %208 = vmatprep.subr.mxu0 0.0
    %209 = vmatpush1.msra.mxu0 0.0
    %210 = vmatprep.subr.mxu0 0.0
    %211 = vmatpush1.msra.mxu0 0.0
    %212 = vmatprep.subr.mxu0 0.0
    %213 = vmatpush1.msra.mxu0 0.0
    %214 = vmatprep.subr.mxu0 0.0
    %215 = vmatpush1.msra.mxu0 0.0
    %216 = vmatprep.subr.mxu0 0.0
    %217 = vmatpush1.msra.mxu0 0.0
    %218 = vmatprep.subr.mxu0 0.0
    %219 = vmatpush1.msra.mxu0 0.0
    %220 = vmatprep.subr.mxu0 0.0
    %221 = vmatpush1.msra.mxu0 0.0
    %222 = vmatprep.subr.mxu0 0.0
    %223 = vmatpush1.msra.mxu0 0.0
    %224 = vmatprep.mubr.f32.mxu0 0.0
    %225 = vmatmul.mubr.f32.gmra.mrb[0].mxu0 %v158
    %v226 = vpop.f32.mrb[0].mxu0
    %v227 = vadd.f32 %v154, %v226
    %v228 = vpop.f32.mrb[0].mxu0
    %229 = vdwg.mxu0
    %vm230 = vcmask 826368
    %231 = vst.msk [vmem:[#allocation8] sm:$0xff] %vm230, %v227
    // Predicated region
    $region34: #{tpu_custom_call.1} parent=1 // pred_check
      _
    $region35: #{tpu_custom_call.1} parent=1 // pred_check_branch
      %233 = sbr.rel (0) target = $region37
    $region36: #{tpu_custom_call.1} parent=1 // pred_region
      %s235 = ssub.s32 128, 128
      %236 = vsyncadd [#allocation4], %s235
      %s238 = sshll.u32 [#allocation8], 4
      %s239 = int_to_ptr.vmem [resolvable:$true] %s238
      %241 = dma.vmem_to_hbm [thread:$0]  %s239, 128, %s5, [#allocation4]
    $region37: #{tpu_custom_call.1} parent=1 // pred_fallthru
      _
    // Predicated region
    $region38: #{tpu_custom_call.1} parent=1 // pred_check
      _
    $region39: #{tpu_custom_call.1} parent=1 // pred_check_branch
      %243 = sbr.rel (0) target = $region41
    $region40: #{tpu_custom_call.1} parent=1 // pred_region
      %244 = dma.done [#allocation4], 128
    $region41: #{tpu_custom_call.1} parent=1 // pred_fallthru
      _
    %245 = vsyncpa [#allocation3], 1
    %246 = vsyncpa [#allocation6], 1
    %247 = vsyncpa [#allocation4], 1

</llo_original>
